<compile_context>
chip_gen: v7x
topology: tpu7x:2x2x1
jax: 0.10.0
libtpu: 0.0.40
codegen_flags: <defaults>
</compile_context>

<pallas_src>
import functools

import jax
import jax.numpy as jnp
from jax.experimental import pallas as pl
from jax.experimental.pallas import tpu as pltpu


def _focal_loss_kernel(predsT_ref, labels_ref, alpha_ref, out_ref, acc_ref,
                       *, gamma, int_gamma, scale):
    i = pl.program_id(0)

    @pl.when(i == 0)
    def _init():
        acc_ref[...] = jnp.zeros_like(acc_ref)

    x = predsT_ref[...].astype(jnp.float32)       # [C, TL]  classes on sublanes
    labels = labels_ref[...]                      # [1, TL]  int32, -1 = padding
    alpha = alpha_ref[...].astype(jnp.float32)    # [C, 1]

    # log-softmax over the class (sublane) axis
    m = jnp.max(x, axis=0, keepdims=True)                             # [1, TL]
    shifted = x - m                                                   # [C, TL]
    lse = jnp.log(jnp.sum(jnp.exp(shifted), axis=0, keepdims=True))   # [1, TL]

    # one-hot gather of the labelled class (and its alpha weight)
    cls = jax.lax.broadcasted_iota(jnp.int32, x.shape, 0)             # [C, TL]
    onehot = (cls == labels).astype(jnp.float32)                      # [C, TL]
    x_lab = jnp.sum(shifted * onehot, axis=0, keepdims=True)          # [1, TL]
    a_lab = jnp.sum(alpha * onehot, axis=0, keepdims=True)            # [1, TL]

    logp = x_lab - lse                                                # [1, TL]
    p = jnp.exp(logp)                                                 # [1, TL]
    q = 1.0 - p
    if int_gamma:
        # integer gamma (default 2): plain VPU multiplies, no pow->log/exp
        w = jnp.ones_like(q)
        for _ in range(int(gamma)):
            w = w * q
    else:
        w = q ** gamma

    # per-sample loss, padded lanes contribute 0 because a_lab == 0 there
    acc_ref[...] += a_lab * w * (-logp)

    @pl.when(i == pl.num_programs(0) - 1)
    def _finalize():
        total = jnp.sum(acc_ref[...])
        out_ref[...] = jnp.full((1, 1), total * scale, dtype=jnp.float32)


class FocalLossPallas:
    """JAX/Pallas port of the PyTorch `focal_loss` module (forward only)."""

    def __init__(self, model, alpha, gamma=2, num_classes=2, size_average=True):
        if model == 1:
            self.model = 21.05
        elif model == 2:
            self.model = 4.52
        elif model == 3:
            self.model = 8.31
        elif model == 4:
            self.model = 1.0
        else:
            raise ValueError("model must be in {1,2,3,4}")
        self.size_average = size_average
        if isinstance(alpha, list):
            assert len(alpha) == num_classes
            self.alpha = jnp.asarray(alpha, dtype=jnp.float32)
        else:
            assert alpha < 1
            a = jnp.zeros((num_classes,), dtype=jnp.float32)
            a = a.at[0].add(alpha)
            a = a.at[1:].add(1.0 - alpha)
            self.alpha = a
        self.gamma = float(gamma)
        self.num_classes = num_classes

    @staticmethod
    def _tile_lanes(C, N):
        # ~2 MiB per (C, TL) f32 input buffer (x2 double-buffered) -> safe on
        # v7x's smaller VMEM while big enough to amortize per-step overhead.
        budget = 2 * 1024 * 1024
        tl = (budget // (max(C, 1) * 4)) // 128 * 128
        tl = max(128, min(tl, 8192))
        n128 = ((max(N, 1) + 127) // 128) * 128
        return min(tl, n128)

    def __call__(self, preds, labels, *, tile_lanes=None):
        N, C = preds.shape
        TL = tile_lanes if tile_lanes is not None else self._tile_lanes(C, N)
        assert TL % 128 == 0
        n_blocks = pl.cdiv(N, TL)
        N_pad = TL * n_blocks

        # Lane-dense layout: classes -> sublanes, batch -> lanes.
        # Native dtype is kept; the cast to f32 happens inside the kernel.
        preds_t = jnp.transpose(preds)                       # [C, N]
        labels_row = labels.reshape(1, N).astype(jnp.int32)  # [1, N]
        if N_pad != N:
            preds_t = jnp.pad(preds_t, ((0, 0), (0, N_pad - N)))
            labels_row = jnp.pad(labels_row, ((0, 0), (0, N_pad - N)),
                                 constant_values=-1)
        alpha2d = self.alpha.reshape(C, 1)

        scale = self.model / N if self.size_average else self.model
        int_gamma = float(self.gamma).is_integer() and self.gamma >= 0

        kernel = functools.partial(
            _focal_loss_kernel,
            gamma=self.gamma, int_gamma=int_gamma, scale=float(scale))

        out = pl.pallas_call(
            kernel,
            out_shape=jax.ShapeDtypeStruct((1, 1), jnp.float32),
            grid=(n_blocks,),
            in_specs=[
                pl.BlockSpec((C, TL), lambda i: (0, i)),   # preds^T tile
                pl.BlockSpec((1, TL), lambda i: (0, i)),   # labels tile
                pl.BlockSpec((C, 1), lambda i: (0, 0)),    # alpha (fetched once)
            ],
            out_specs=pl.BlockSpec((1, 1), lambda i: (0, 0)),
            scratch_shapes=[pltpu.VMEM((1, TL), jnp.float32)],
            compiler_params=pltpu.CompilerParams(
                dimension_semantics=("arbitrary",)),
        )(preds_t, labels_row, alpha2d)
        return out[0, 0]


def _reference(preds, labels, alpha, gamma, model, size_average=True):
    logsoft = jax.nn.log_softmax(preds.astype(jnp.float32), axis=1)
    soft = jnp.exp(logsoft)
    p = jnp.take_along_axis(soft, labels.reshape(-1, 1), axis=1)
    lp = jnp.take_along_axis(logsoft, labels.reshape(-1, 1), axis=1)
    a = alpha[labels]
    loss = -((1.0 - p) ** gamma) * lp            # [N, 1]
    loss = a * loss.T                            # [1, N]
    red = loss.mean() if size_average else loss.sum()
    return red * model


if __name__ == "__main__":
    key = jax.random.PRNGKey(0)

    # --- check 1: default 2-class, tiny batch (single tile) ---
    N, C = 8, 2
    k1, k2, k3, k4 = jax.random.split(key, 4)
    preds = jax.random.normal(k1, (N, C), dtype=jnp.float32)
    labels = jax.random.randint(k2, (N,), 0, C, dtype=jnp.int32)

    fl = FocalLossPallas(model=2, alpha=0.25, gamma=2, num_classes=C,
                         size_average=True)
    loss = jax.block_until_ready(fl(preds, labels))
    ref = _reference(preds, labels, fl.alpha, fl.gamma, fl.model)
    assert jnp.allclose(loss, ref, rtol=1e-5, atol=1e-6), (loss, ref)

    # --- check 2: 5 classes, list alpha, ragged batch across multiple tiles ---
    N2, C2 = 300, 5
    preds2 = jax.random.normal(k3, (N2, C2), dtype=jnp.float32)
    labels2 = jax.random.randint(k4, (N2,), 0, C2, dtype=jnp.int32)
    fl2 = FocalLossPallas(model=3, alpha=[0.1, 0.2, 0.3, 0.2, 0.2], gamma=2,
                          num_classes=C2, size_average=True)
    loss2 = jax.block_until_ready(fl2(preds2, labels2, tile_lanes=128))
    ref2 = _reference(preds2, labels2, fl2.alpha, fl2.gamma, fl2.model)
    assert jnp.allclose(loss2, ref2, rtol=1e-5, atol=1e-6), (loss2, ref2)

    print("KERNEL_OK")
</pallas_src>

<mosaic_0001>
module attributes {stable_mosaic.version = 11 : i64} {
  func.func @_focal_loss_kernel(%arg0: i32, %arg1: memref<2x128xf32, #tpu.memory_space<vmem>>, %arg2: memref<1x128xi32, #tpu.memory_space<vmem>>, %arg3: memref<2x1xf32, #tpu.memory_space<vmem>>, %arg4: memref<1x1xf32, #tpu.memory_space<vmem>>, %arg5: memref<1x128xf32, #tpu.memory_space<vmem>>) attributes {dimension_semantics = [#tpu.dimension_semantics<arbitrary>], iteration_bounds = array<i64: 1>, scalar_prefetch = 0 : i64, scratch_operands = 1 : i64, tpu.core_type = #tpu.core_type<tc>, window_params = [{transform_indices = @transform_0, window_bounds = array<i64: 2, 128>}, {transform_indices = @transform_1, window_bounds = array<i64: 1, 128>}, {pipeline_mode = #tpu.pipeline_mode<synchronous>, transform_indices = @transform_2, window_bounds = array<i64: 2, 1>}, {pipeline_mode = #tpu.pipeline_mode<synchronous>, transform_indices = @transform_3, window_bounds = array<i64: 1, 1>}]} {
    %c0_i32 = arith.constant 0 : i32
    %0 = arith.cmpi eq, %arg0, %c0_i32 : i32
    %1 = arith.extui %0 : i1 to i32
    %c0_i32_0 = arith.constant 0 : i32
    %2 = arith.cmpi ne, %1, %c0_i32_0 : i32
    scf.if %2 {
      %cst_18 = arith.constant 0.000000e+00 : f32
      %43 = vector.broadcast %cst_18 : f32 to vector<1x128xf32>
      %c0_19 = arith.constant 0 : index
      %c0_20 = arith.constant 0 : index
      %44 = vector.load %arg5[%c0_19, %c0_20] : memref<1x128xf32, #tpu.memory_space<vmem>>, vector<1x128xf32>
      tpu.vector_store %arg5[%c0_19, %c0_20], %43 {strides = array<i32>} : memref<1x128xf32, #tpu.memory_space<vmem>>, vector<1x128xf32>,
    } else {
    }
    %c0 = arith.constant 0 : index
    %c0_1 = arith.constant 0 : index
    %3 = vector.load %arg1[%c0, %c0_1] : memref<2x128xf32, #tpu.memory_space<vmem>>, vector<2x128xf32>
    %c0_2 = arith.constant 0 : index
    %c0_3 = arith.constant 0 : index
    %4 = vector.load %arg2[%c0_2, %c0_3] : memref<1x128xi32, #tpu.memory_space<vmem>>, vector<1x128xi32>
    %c0_4 = arith.constant 0 : index
    %c0_5 = arith.constant 0 : index
    %5 = vector.load %arg3[%c0_4, %c0_5] : memref<2x1xf32, #tpu.memory_space<vmem>>, vector<2x1xf32>
    %cst = arith.constant dense<0xFF800000> : vector<128xf32>
    %6 = vector.multi_reduction <maximumf>, %3, %cst [0] : vector<2x128xf32> to vector<128xf32>
    %7 = vector.shape_cast %6 : vector<128xf32> to vector<1x128xf32>
    %8 = vector.broadcast %7 : vector<1x128xf32> to vector<2x128xf32>
    %9 = arith.subf %3, %8 : vector<2x128xf32>
    %10 = math.exp %9 : vector<2x128xf32>
    %cst_6 = arith.constant dense<0.000000e+00> : vector<128xf32>
    %11 = vector.multi_reduction <add>, %10, %cst_6 [0] : vector<2x128xf32> to vector<128xf32>
    %12 = vector.shape_cast %11 : vector<128xf32> to vector<1x128xf32>
    %13 = math.log %12 : vector<1x128xf32>
    %14 = tpu.iota {dimensions = array<i32: 0>} : vector<2x128xi32>
    %15 = vector.broadcast %4 : vector<1x128xi32> to vector<2x128xi32>
    %16 = arith.cmpi eq, %14, %15 : vector<2x128xi32>
    %17 = arith.extui %16 : vector<2x128xi1> to vector<2x128xi32>
    %18 = arith.sitofp %17 : vector<2x128xi32> to vector<2x128xf32>
    %19 = arith.mulf %9, %18 : vector<2x128xf32>
    %cst_7 = arith.constant dense<0.000000e+00> : vector<128xf32>
    %20 = vector.multi_reduction <add>, %19, %cst_7 [0] : vector<2x128xf32> to vector<128xf32>
    %21 = vector.shape_cast %20 : vector<128xf32> to vector<1x128xf32>
    %22 = vector.broadcast %5 : vector<2x1xf32> to vector<2x128xf32>
    %23 = arith.mulf %22, %18 : vector<2x128xf32>
    %cst_8 = arith.constant dense<0.000000e+00> : vector<128xf32>
    %24 = vector.multi_reduction <add>, %23, %cst_8 [0] : vector<2x128xf32> to vector<128xf32>
    %25 = vector.shape_cast %24 : vector<128xf32> to vector<1x128xf32>
    %26 = arith.subf %21, %13 : vector<1x128xf32>
    %27 = math.exp %26 : vector<1x128xf32>
    %cst_9 = arith.constant 1.000000e+00 : f32
    %28 = vector.broadcast %cst_9 : f32 to vector<1x128xf32>
    %29 = arith.subf %28, %27 : vector<1x128xf32>
    %cst_10 = arith.constant 1.000000e+00 : f32
    %30 = vector.broadcast %cst_10 : f32 to vector<1x128xf32>
    %31 = arith.mulf %30, %29 : vector<1x128xf32>
    %32 = arith.mulf %31, %29 : vector<1x128xf32>
    %c0_11 = arith.constant 0 : index
    %c0_12 = arith.constant 0 : index
    %33 = vector.load %arg5[%c0_11, %c0_12] : memref<1x128xf32, #tpu.memory_space<vmem>>, vector<1x128xf32>
    %34 = arith.mulf %25, %32 : vector<1x128xf32>
    %cst_13 = arith.constant 0.000000e+00 : f32
    %35 = vector.broadcast %cst_13 : f32 to vector<1x128xf32>
    %36 = arith.subf %35, %26 : vector<1x128xf32>
    %37 = arith.mulf %34, %36 : vector<1x128xf32>
    %38 = arith.addf %33, %37 : vector<1x128xf32>
    %c0_14 = arith.constant 0 : index
    %c0_15 = arith.constant 0 : index
    %39 = vector.load %arg5[%c0_14, %c0_15] : memref<1x128xf32, #tpu.memory_space<vmem>>, vector<1x128xf32>
    tpu.vector_store %arg5[%c0_14, %c0_15], %38 {strides = array<i32>} : memref<1x128xf32, #tpu.memory_space<vmem>>, vector<1x128xf32>,
    %c0_i32_16 = arith.constant 0 : i32
    %40 = arith.cmpi eq, %arg0, %c0_i32_16 : i32
    %41 = arith.extui %40 : i1 to i32
    %c0_i32_17 = arith.constant 0 : i32
    %42 = arith.cmpi ne, %41, %c0_i32_17 : i32
    scf.if %42 {
      %c0_18 = arith.constant 0 : index
      %c0_19 = arith.constant 0 : index
      %43 = vector.load %arg5[%c0_18, %c0_19] : memref<1x128xf32, #tpu.memory_space<vmem>>, vector<1x128xf32>
      %44 = vector.shape_cast %43 : vector<1x128xf32> to vector<1x1x128xf32>
      %cst_20 = arith.constant dense<0.000000e+00> : vector<1xf32>
      %45 = vector.multi_reduction <add>, %44, %cst_20 [1, 2] : vector<1x1x128xf32> to vector<1xf32>
      %46 = vector.shape_cast %45 : vector<1xf32> to vector<1x1x1xf32>
      %47 = vector.extract %46[0, 0, 0] : f32 from vector<1x1x1xf32>
      %cst_21 = arith.constant 5.650000e-01 : f32
      %48 = arith.mulf %47, %cst_21 : f32
      %49 = vector.broadcast %48 : f32 to vector<1x1xf32>
      %c0_22 = arith.constant 0 : index
      %c0_23 = arith.constant 0 : index
      %50 = vector.load %arg4[%c0_22, %c0_23] : memref<1x1xf32, #tpu.memory_space<vmem>>, vector<1x1xf32>
      tpu.vector_store %arg4[%c0_22, %c0_23], %49 {strides = array<i32>} : memref<1x1xf32, #tpu.memory_space<vmem>>, vector<1x1xf32>,
    } else {
    }
    return
  }
  func.func @transform_0(%arg0: i32) -> (i32, i32) {
    %c0_i32 = arith.constant 0 : i32
    %c0_i32_0 = arith.constant 0 : i32
    return %c0_i32, %arg0 : i32, i32
  }
  func.func @transform_1(%arg0: i32) -> (i32, i32) {
    %c0_i32 = arith.constant 0 : i32
    %c0_i32_0 = arith.constant 0 : i32
    return %c0_i32, %arg0 : i32, i32
  }
  func.func @transform_2(%arg0: i32) -> (i32, i32) {
    %c0_i32 = arith.constant 0 : i32
    %c0_i32_0 = arith.constant 0 : i32
    %c0_i32_1 = arith.constant 0 : i32
    return %c0_i32, %c0_i32_0 : i32, i32
  }
  func.func @transform_3(%arg0: i32) -> (i32, i32) {
    %c0_i32 = arith.constant 0 : i32
    %c0_i32_0 = arith.constant 0 : i32
    %c0_i32_1 = arith.constant 0 : i32
    return %c0_i32, %c0_i32_0 : i32, i32
  }
}

</mosaic_0001>

<llo_original>
// kernel: tpu_custom_call.1
$region0: #{tpu_custom_call.1}
  #allocation0 [shape = 'u32[]', space=smem, size = 0x4, offset = 0x4, fixed_abs, tag = 'smem constant byte address 0x4 - core index']
  #allocation1 [shape = 'u32[144,128]{1,0:T(1,128)}', space=vmem, size = 0x12000, scoped, tag = 'internal scratch']
  #allocation2 [shape = 'f32[1,128]{1,0:T(1,128)}', space=vmem, size = 0x200, scoped, tag = 'scratch operand']
  %s0 = inlined_call_operand.vmem [shape: f32[2,128], index: 0, kind: input, shape index: {}]
  %s1 = inlined_call_operand.vmem [shape: s32[1,128], index: 1, kind: input, shape index: {}]
  %s2 = inlined_call_operand.vmem [shape: f32[2,1], index: 2, kind: input, shape index: {}]
  %s3 = inlined_call_operand.hbm [shape: f32[1,1], index: 3, kind: output, shape index: {}]
  %s4 = sld [smem:[#allocation0]]
  $region30: #{tpu_custom_call.1} parent=0
    _
  %s6 = ssub.s32 1, %s4
  %s7 = scalar_select 0, %s6, %s4
  $region1: #{tpu_custom_call.1} parent=0
    #allocation3 [shape = 'u8[512]{0}', space=vmem, size = 0x400, scoped, tag = 'output window, operand 0, single buffered']
    #allocation4 [shape = 's32[1]{0}', space=sflag, size = 0x4, scoped, tag = 'scoped memory for tpu_custom_call.1']
    %8 = vsyncpa [#allocation4], 0
    // Predicated region
    $region2: #{tpu_custom_call.1} parent=1 // pred_check
      _
    $region3: #{tpu_custom_call.1} parent=1 // pred_check_branch
      %10 = sbr.rel (0) target = $region5
    $region4: #{tpu_custom_call.1} parent=1 // pred_region
      _
    $region5: #{tpu_custom_call.1} parent=1 // pred_fallthru
      _
    // Predicated region
    $region6: #{tpu_custom_call.1} parent=1 // pred_check
      _
    $region7: #{tpu_custom_call.1} parent=1 // pred_check_branch
      %12 = sbr.rel (0) target = $region9
    $region8: #{tpu_custom_call.1} parent=1 // pred_region
      _
    $region9: #{tpu_custom_call.1} parent=1 // pred_fallthru
      _
    // Predicated region
    $region10: #{tpu_custom_call.1} parent=1 // pred_check
      _
    $region11: #{tpu_custom_call.1} parent=1 // pred_check_branch
      %14 = sbr.rel (0) target = $region13
    $region12: #{tpu_custom_call.1} parent=1 // pred_region
      _
    $region13: #{tpu_custom_call.1} parent=1 // pred_fallthru
      _
    %p15 = scmp.eq.s32.totalorder 0, 0
    // Predicated region
    $region14: #{tpu_custom_call.1} parent=1 // pred_check
      %p16 = pneg %p15
    $region15: #{tpu_custom_call.1} parent=1 // pred_check_branch
      %18 = sbr.rel (%p16) target = $region17
    $region16: #{tpu_custom_call.1} parent=1 // pred_region
      %19 = vst [vmem:[#allocation2] sm:$0x1] 0.0
    $region17: #{tpu_custom_call.1} parent=1 // pred_fallthru
      _
    %v20 = vld [vmem:[%s0] sm:$0x3]
    %v21 = vld [vmem:[%s1] sm:$0x1]
    %v22 = vld [vmem:[%s2] sm:$0x3]
    %vm23 = vcmask 1041408
    %v24 = vsel %vm23, %v20, -inf
    %v25 = vrot.slane %v24, 4
    %v26 = vmax.f32 %v24, %v25
    %v27 = vrot.slane %v26, 2
    %v28 = vmax.f32 %v26, %v27
    %v29 = vrot.slane %v28, 1
    %v30 = vmax.f32 %v28, %v29
    %v31 = vsub.f32 %v20, %v30
    %v32 = vmul.f32 %v31, 1.442695
    %v33 = vpow.pop %v32
    %v34 = vsel %vm23, %v33, 0.0
    %v35 = vrot.slane %v34, 4
    %v36 = vadd.f32 %v34, %v35
    %v37 = vrot.slane %v36, 2
    %v38 = vadd.f32 %v36, %v37
    %v39 = vrot.slane %v38, 1
    %v40 = vadd.f32 %v38, %v39
    %v41 = vlog2.pop %v40
    %v42 = vmul.f32 %v41, 0.6931472
    %v43 = vlaneseq
    %v44 = vshrl.u32 %v43, 7
    %v45 = vlaneseq
    %v46 = vshrl.u32 %v45, 7
    %v47 = vsub.s32 0, %v46
    %v48 = vrot.slane %v21, %v47
    %vm49 = vcmp.eq.s32.totalorder %v44, %v48
    %v50 = vsel %vm49, 1, 0
    %v51 = vcvt.s32.f32 %v50
    %v52 = vmul.f32 %v31, %v51
    %v53 = vsel %vm23, %v52, 0.0
    %v54 = vrot.slane %v53, 4
    %v55 = vadd.f32 %v53, %v54
    %v56 = vrot.slane %v55, 2
    %v57 = vadd.f32 %v55, %v56
    %v58 = vrot.slane %v57, 1
    %v59 = vadd.f32 %v57, %v58
    %61 = vset.pattern.permute.xlu0 0
    %62 = vperm.xlu0 %61, %v22
    %v63 = vpop.permute.xlu0 %62
    %v65 = vmul.f32 %v63, %v51
    %v66 = vsel %vm23, %v65, 0.0
    %v67 = vrot.slane %v66, 4
    %v68 = vadd.f32 %v66, %v67
    %v69 = vrot.slane %v68, 2
    %v70 = vadd.f32 %v68, %v69
    %v71 = vrot.slane %v70, 1
    %v72 = vadd.f32 %v70, %v71
    %v73 = vsub.f32 %v59, %v42
    %v74 = vmul.f32 %v73, 1.442695
    %v75 = vpow.pop %v74
    %v76 = vsub.f32 1.0, %v75
    %v77 = vmul.f32 %v76, %v76
    %v78 = vld [vmem:[#allocation2] sm:$0x1]
    %v79 = vmul.f32 %v72, %v77
    %v80 = vsub.f32 0.0, %v73
    %v81 = vmul.f32 %v79, %v80
    %v82 = vadd.f32 %v78, %v81
    %83 = vst [vmem:[#allocation2] sm:$0x1] %v82
    // Predicated region
    $region18: #{tpu_custom_call.1} parent=1 // pred_check
      %p84 = pneg %p15
    $region19: #{tpu_custom_call.1} parent=1 // pred_check_branch
      %86 = sbr.rel (%p84) target = $region21
    $region20: #{tpu_custom_call.1} parent=1 // pred_region
      %v87 = vld [vmem:[#allocation2] sm:$0x1]
      %vm88 = vcmask 1040384
      %v89 = vsel %vm88, %v87, 0.0
      %90 = vadd.xlane.f32.xlu0 %v89
      %v91 = vpop.xlane.xlu0 %90
      %v92 = vrot.slane %v91, 4
      %v93 = vadd.f32 %v91, %v92
      %v94 = vrot.slane %v93, 2
      %v95 = vadd.f32 %v93, %v94
      %v96 = vrot.slane %v95, 1
      %v97 = vadd.f32 %v95, %v96
      %s98 = vtos %v97
      %s99 = smul.f32 %s98, 0.565
      %v100 = vstv %s99
      %vm101 = vcmask 0
      %102 = vst.msk [vmem:[#allocation3] sm:$0x1] %vm101, %v100
    $region21: #{tpu_custom_call.1} parent=1 // pred_fallthru
      _
    // Predicated region
    $region22: #{tpu_custom_call.1} parent=1 // pred_check
      _
    $region23: #{tpu_custom_call.1} parent=1 // pred_check_branch
      %104 = sbr.rel (0) target = $region25
    $region24: #{tpu_custom_call.1} parent=1 // pred_region
      %s106 = ssub.s32 16, 16
      %107 = vsyncadd [#allocation4], %s106
      %s109 = sshll.u32 [#allocation3], 4
      %s110 = int_to_ptr.vmem [resolvable:$true] %s109
      %112 = dma.vmem_to_hbm [thread:$0]  %s110, 16, %s3, [#allocation4]
    $region25: #{tpu_custom_call.1} parent=1 // pred_fallthru
      _
    // Predicated region
    $region26: #{tpu_custom_call.1} parent=1 // pred_check
      _
    $region27: #{tpu_custom_call.1} parent=1 // pred_check_branch
      %114 = sbr.rel (0) target = $region29
    $region28: #{tpu_custom_call.1} parent=1 // pred_region
      %115 = dma.done [#allocation4], 16
    $region29: #{tpu_custom_call.1} parent=1 // pred_fallthru
      _
    %116 = vsyncpa [#allocation4], 1

</llo_original>
